<compile_context>
chip_gen: v7x
topology: tpu7x:2x2x1
jax: 0.10.0
libtpu: 0.0.40
codegen_flags: <defaults>
</compile_context>

<pallas_src>
import jax
import jax.numpy as jnp
from jax import lax
from jax.experimental import pallas as pl
from jax.experimental.pallas import tpu as pltpu


def _mnist_block_kernel(scale_ref, x_ref, w_ref, b_ref, o_ref):
    # scale_ref: (1,1) f32 in SMEM; x_ref: (TM, W); w_ref: (W_out, W_in) (PyTorch
    # Linear layout, resident in VMEM); b_ref: (1, W); o_ref: (TM, W).
    x = x_ref[...]                                              # [TM, W] f32
    # x @ W^T without materializing the transpose: contract last axes of both.
    y = lax.dot_general(
        x, w_ref[...],
        dimension_numbers=(((1,), (1,)), ((), ())),
        preferred_element_type=jnp.float32)                     # MXU -> [TM, W]
    y = y + b_ref[...]                                          # broadcast [1, W]
    s = scale_ref[0, 0]                                         # SMEM scalar
    o_ref[...] = (s * jnp.maximum(y, 0.0) + x).astype(o_ref.dtype)


def mnist_block(x, weight, bias, scaling=1.0, tile_m=256):
    """x: [B, W] f32; weight: [W_out, W_in] (PyTorch Linear layout);
    bias: [W] f32; scaling: python float or scalar. Returns [B, W] f32."""
    B, W = x.shape

    # Batch tile: saturate the MXU M-dim (256 on v6e/v7x) but never exceed B.
    tm = min(int(tile_m), B)
    n_tiles = pl.cdiv(B, tm)
    Bp = n_tiles * tm
    if Bp != B:
        x_in = jnp.pad(x, ((0, Bp - B), (0, 0)))
    else:
        x_in = x

    scale_arr = jnp.asarray(scaling, dtype=jnp.float32).reshape(1, 1)
    b2 = bias.reshape(1, W)

    # VMEM budget per step (f32): 2x x-tile + 2x out-tile + weight + bias.
    # For W=128, TILE_M=256 this is well under even v7x's 64 MiB.
    flops = 2 * Bp * W * W
    bytes_accessed = 4 * (Bp * W * 2 + W * W + W)

    out = pl.pallas_call(
        _mnist_block_kernel,
        out_shape=jax.ShapeDtypeStruct((Bp, W), x.dtype),
        grid=(n_tiles,),
        in_specs=[
            pl.BlockSpec(memory_space=pltpu.MemorySpace.SMEM),   # scaling scalar
            pl.BlockSpec((tm, W), lambda i: (i, 0)),             # x tile (pipelined)
            pl.BlockSpec((W, W), lambda i: (0, 0)),              # weight (VMEM-resident)
            pl.BlockSpec((1, W), lambda i: (0, 0)),              # bias   (VMEM-resident)
        ],
        out_specs=pl.BlockSpec((tm, W), lambda i: (i, 0)),       # out tile
        compiler_params=pltpu.CompilerParams(
            dimension_semantics=("parallel",)),                  # megacore on v7x
        cost_estimate=pl.CostEstimate(
            flops=flops, transcendentals=0, bytes_accessed=bytes_accessed),
    )(scale_arr, x_in, weight, b2)

    if Bp != B:
        out = out[:B]
    return out


def _reference(x, weight, bias, scaling):
    y = x @ weight.T + bias
    return jnp.float32(scaling) * jnp.maximum(y, 0.0) + x


if __name__ == "__main__":
    WIDTH = 128
    SCALING = 0.5

    key = jax.random.PRNGKey(0)
    kx, kw, kb, kx2 = jax.random.split(key, 4)

    # Deterministic parameter init mirroring the module's __init__:
    #   nn.init.xavier_normal_ on weight (std = sqrt(2/(fan_in+fan_out)))
    xavier_std = (2.0 / (WIDTH + WIDTH)) ** 0.5
    weight = xavier_std * jax.random.normal(kw, (WIDTH, WIDTH), dtype=jnp.float32)
    #   PyTorch Linear default bias init: U(-1/sqrt(fan_in), 1/sqrt(fan_in))
    bound = 1.0 / (WIDTH ** 0.5)
    bias = jax.random.uniform(kb, (WIDTH,), dtype=jnp.float32,
                              minval=-bound, maxval=bound)

    # Case 1: small batch (module-consistent shapes).
    B1 = 8
    x1 = jax.random.normal(kx, (B1, WIDTH), dtype=jnp.float32)
    out1 = jax.block_until_ready(mnist_block(x1, weight, bias, scaling=SCALING))
    ref1 = _reference(x1, weight, bias, SCALING)
    assert out1.shape == (B1, WIDTH)
    assert jnp.allclose(out1, ref1, atol=1e-5, rtol=1e-5), "mismatch (B=8)"

    # Case 2: batch not a multiple of the tile -> exercises grid + padding path.
    B2 = 300
    x2 = jax.random.normal(kx2, (B2, WIDTH), dtype=jnp.float32)
    out2 = jax.block_until_ready(mnist_block(x2, weight, bias, scaling=SCALING))
    ref2 = _reference(x2, weight, bias, SCALING)
    assert out2.shape == (B2, WIDTH)
    assert jnp.allclose(out2, ref2, atol=1e-5, rtol=1e-5), "mismatch (B=300)"

    print("KERNEL_OK")
</pallas_src>

<mosaic_0001>
module attributes {stable_mosaic.version = 11 : i64} {
  func.func @_mnist_block_kernel(%arg0: i32, %arg1: memref<1x1xf32, #tpu.memory_space<smem>>, %arg2: memref<8x128xf32, #tpu.memory_space<vmem>>, %arg3: memref<128x128xf32, #tpu.memory_space<vmem>>, %arg4: memref<1x128xf32, #tpu.memory_space<vmem>>, %arg5: memref<8x128xf32, #tpu.memory_space<vmem>>) attributes {dimension_semantics = [#tpu.dimension_semantics<parallel>], iteration_bounds = array<i64: 1>, scalar_prefetch = 0 : i64, scratch_operands = 0 : i64, tpu.core_type = #tpu.core_type<tc>, window_params = [{transform_indices = @transform_0, window_bounds = array<i64: 1, 1>}, {transform_indices = @transform_1, window_bounds = array<i64: 8, 128>}, {pipeline_mode = #tpu.pipeline_mode<synchronous>, transform_indices = @transform_2, window_bounds = array<i64: 128, 128>}, {pipeline_mode = #tpu.pipeline_mode<synchronous>, transform_indices = @transform_3, window_bounds = array<i64: 1, 128>}, {transform_indices = @transform_4, window_bounds = array<i64: 8, 128>}]} {
    %c0 = arith.constant 0 : index
    %c0_0 = arith.constant 0 : index
    %0 = vector.load %arg2[%c0, %c0_0] : memref<8x128xf32, #tpu.memory_space<vmem>>, vector<8x128xf32>
    %c0_1 = arith.constant 0 : index
    %c0_2 = arith.constant 0 : index
    %1 = vector.load %arg3[%c0_1, %c0_2] : memref<128x128xf32, #tpu.memory_space<vmem>>, vector<128x128xf32>
    %cst = arith.constant dense<0.000000e+00> : vector<8x128xf32>
    %2 = tpu.matmul %0, %1, %cst {dimension_numbers = #tpu.dot_dimension_numbers<[1], [1], [0], [0], [0, 0, 1, 0], [], []>} : vector<8x128xf32>, vector<128x128xf32>, vector<8x128xf32> -> vector<8x128xf32>
    %c0_3 = arith.constant 0 : index
    %c0_4 = arith.constant 0 : index
    %3 = vector.load %arg4[%c0_3, %c0_4] : memref<1x128xf32, #tpu.memory_space<vmem>>, vector<1x128xf32>
    %4 = vector.broadcast %3 : vector<1x128xf32> to vector<8x128xf32>
    %5 = arith.addf %2, %4 : vector<8x128xf32>
    %c0_5 = arith.constant 0 : index
    %c0_6 = arith.constant 0 : index
    %6 = memref.load %arg1[%c0_5, %c0_6] : memref<1x1xf32, #tpu.memory_space<smem>>
    %cst_7 = arith.constant 0.000000e+00 : f32
    %7 = vector.broadcast %cst_7 : f32 to vector<8x128xf32>
    %8 = arith.maximumf %5, %7 : vector<8x128xf32>
    %9 = vector.broadcast %6 : f32 to vector<8x128xf32>
    %10 = arith.mulf %9, %8 : vector<8x128xf32>
    %11 = arith.addf %10, %0 : vector<8x128xf32>
    %c0_8 = arith.constant 0 : index
    %c0_9 = arith.constant 0 : index
    %12 = vector.load %arg5[%c0_8, %c0_9] : memref<8x128xf32, #tpu.memory_space<vmem>>, vector<8x128xf32>
    tpu.vector_store %arg5[%c0_8, %c0_9], %11 {strides = array<i32>} : memref<8x128xf32, #tpu.memory_space<vmem>>, vector<8x128xf32>,
    return
  }
  func.func @transform_0(%arg0: i32) -> (i32, i32) {
    %c0_i32 = arith.constant 0 : i32
    %c0_i32_0 = arith.constant 0 : i32
    %c0_i32_1 = arith.constant 0 : i32
    return %c0_i32, %c0_i32_0 : i32, i32
  }
  func.func @transform_1(%arg0: i32) -> (i32, i32) {
    %c0_i32 = arith.constant 0 : i32
    %c0_i32_0 = arith.constant 0 : i32
    return %arg0, %c0_i32 : i32, i32
  }
  func.func @transform_2(%arg0: i32) -> (i32, i32) {
    %c0_i32 = arith.constant 0 : i32
    %c0_i32_0 = arith.constant 0 : i32
    %c0_i32_1 = arith.constant 0 : i32
    return %c0_i32, %c0_i32_0 : i32, i32
  }
  func.func @transform_3(%arg0: i32) -> (i32, i32) {
    %c0_i32 = arith.constant 0 : i32
    %c0_i32_0 = arith.constant 0 : i32
    %c0_i32_1 = arith.constant 0 : i32
    return %c0_i32, %c0_i32_0 : i32, i32
  }
  func.func @transform_4(%arg0: i32) -> (i32, i32) {
    %c0_i32 = arith.constant 0 : i32
    %c0_i32_0 = arith.constant 0 : i32
    return %arg0, %c0_i32 : i32, i32
  }
}

</mosaic_0001>

<llo_original>
// kernel: tpu_custom_call.1
$region0: #{tpu_custom_call.1}
  #allocation0 [shape = 'u32[]', space=smem, size = 0x4, offset = 0x4, fixed_abs, tag = 'smem constant byte address 0x4 - core index']
  #allocation1 [shape = 'u32[144,128]{1,0:T(1,128)}', space=vmem, size = 0x12000, scoped, tag = 'internal scratch']
  #allocation2 [shape = 'f32[1,1]{1,0:T(1,128)S(6)}', space=smem, size = 0x200, scoped, tag = 'scoped memory for tpu_custom_call.1']
  %s0 = inlined_call_operand.<no memory space> [shape: f32[1,1], index: 0, kind: input, shape index: {}]
  %s1 = inlined_call_operand.hbm [shape: f32[8,128], index: 1, kind: input, shape index: {}]
  %s2 = inlined_call_operand.hbm [shape: f32[128,128], index: 2, kind: input, shape index: {}]
  %s3 = inlined_call_operand.vmem [shape: f32[1,128], index: 3, kind: input, shape index: {}]
  %s4 = inlined_call_operand.hbm [shape: f32[8,128], index: 4, kind: output, shape index: {}]
  %s5 = sld [smem:[#allocation0]]
  $region34: #{tpu_custom_call.1} parent=0
    _
  %s7 = ssub.s32 1, %s5
  %s8 = scalar_select 0, %s7, %s5
  %9 = sst [smem:[#allocation2]] %s0
  $region1: #{tpu_custom_call.1} parent=0
    #allocation3 [shape = 'u8[4096]{0}', space=vmem, size = 0x1000, scoped, tag = 'input window, operand 1, single buffered']
    #allocation4 [shape = 's32[1]{0}', space=sflag, size = 0x4, scoped, tag = 'scoped memory for tpu_custom_call.1']
    #allocation5 [shape = 's32[1]{0}', space=sflag, size = 0x4, scoped, tag = 'scoped memory for tpu_custom_call.1']
    #allocation6 [shape = 'u8[65536]{0}', space=vmem, size = 0x10000, scoped, tag = 'input window, operand 2, single buffered']
    #allocation7 [shape = 's32[1]{0}', space=sflag, size = 0x4, scoped, tag = 'scoped memory for tpu_custom_call.1']
    #allocation8 [shape = 'u8[4096]{0}', space=vmem, size = 0x1000, scoped, tag = 'output window, operand 0, single buffered']
    %10 = vsyncpa [#allocation4], 0
    %11 = vsyncpa [#allocation7], 0
    %12 = vsyncpa [#allocation5], 0
    // Predicated region
    $region2: #{tpu_custom_call.1} parent=1 // pred_check
      _
    $region3: #{tpu_custom_call.1} parent=1 // pred_check_branch
      %14 = sbr.rel (0) target = $region5
    $region4: #{tpu_custom_call.1} parent=1 // pred_region
      _
    $region5: #{tpu_custom_call.1} parent=1 // pred_fallthru
      _
    // Predicated region
    $region6: #{tpu_custom_call.1} parent=1 // pred_check
      _
    $region7: #{tpu_custom_call.1} parent=1 // pred_check_branch
      %16 = sbr.rel (0) target = $region9
    $region8: #{tpu_custom_call.1} parent=1 // pred_region
      %s18 = ssub.s32 128, 128
      %19 = vsyncadd [#allocation4], %s18
      %s21 = sshll.u32 [#allocation3], 4
      %s22 = int_to_ptr.vmem [resolvable:$true] %s21
      %24 = dma.hbm_to_vmem [thread:$0]  %s1, 128, %s22, [#allocation4]
    $region9: #{tpu_custom_call.1} parent=1 // pred_fallthru
      _
    // Predicated region
    $region10: #{tpu_custom_call.1} parent=1 // pred_check
      _
    $region11: #{tpu_custom_call.1} parent=1 // pred_check_branch
      %26 = sbr.rel (0) target = $region13
    $region12: #{tpu_custom_call.1} parent=1 // pred_region
      %s28 = ssub.s32 2048, 2048
      %29 = vsyncadd [#allocation7], %s28
      %s30 = sshll.u32 [#allocation6], 4
      %s31 = int_to_ptr.vmem [resolvable:$true] %s30
      %36 = dma.hbm_to_vmem [thread:$0]  %s2, 2048, %s31, [#allocation7], 128, 128, 8
    $region13: #{tpu_custom_call.1} parent=1 // pred_fallthru
      _
    // Predicated region
    $region14: #{tpu_custom_call.1} parent=1 // pred_check
      _
    $region15: #{tpu_custom_call.1} parent=1 // pred_check_branch
      %38 = sbr.rel (0) target = $region17
    $region16: #{tpu_custom_call.1} parent=1 // pred_region
      _
    $region17: #{tpu_custom_call.1} parent=1 // pred_fallthru
      _
    // Predicated region
    $region18: #{tpu_custom_call.1} parent=1 // pred_check
      _
    $region19: #{tpu_custom_call.1} parent=1 // pred_check_branch
      %40 = sbr.rel (0) target = $region21
    $region20: #{tpu_custom_call.1} parent=1 // pred_region
      %41 = dma.done [#allocation4], 128
    $region21: #{tpu_custom_call.1} parent=1 // pred_fallthru
      _
    // Predicated region
    $region22: #{tpu_custom_call.1} parent=1 // pred_check
      _
    $region23: #{tpu_custom_call.1} parent=1 // pred_check_branch
      %43 = sbr.rel (0) target = $region25
    $region24: #{tpu_custom_call.1} parent=1 // pred_region
      %44 = dma.done [#allocation7], 2048
    $region25: #{tpu_custom_call.1} parent=1 // pred_fallthru
      _
    %v45 = vld [vmem:[#allocation3] sm:$0xff]
    %v46 = vld [vmem:[#allocation6] sm:$0xff]
    %v47 = vld [vmem:[#allocation6 + $0x8] sm:$0xff]
    %v48 = vld [vmem:[#allocation6 + $0x10] sm:$0xff]
    %v49 = vld [vmem:[#allocation6 + $0x18] sm:$0xff]
    %v50 = vld [vmem:[#allocation6 + $0x20] sm:$0xff]
    %v51 = vld [vmem:[#allocation6 + $0x28] sm:$0xff]
    %v52 = vld [vmem:[#allocation6 + $0x30] sm:$0xff]
    %v53 = vld [vmem:[#allocation6 + $0x38] sm:$0xff]
    %v54 = vld [vmem:[#allocation6 + $0x40] sm:$0xff]
    %v55 = vld [vmem:[#allocation6 + $0x48] sm:$0xff]
    %v56 = vld [vmem:[#allocation6 + $0x50] sm:$0xff]
    %v57 = vld [vmem:[#allocation6 + $0x58] sm:$0xff]
    %v58 = vld [vmem:[#allocation6 + $0x60] sm:$0xff]
    %v59 = vld [vmem:[#allocation6 + $0x68] sm:$0xff]
    %v60 = vld [vmem:[#allocation6 + $0x70] sm:$0xff]
    %v61 = vld [vmem:[#allocation6 + $0x78] sm:$0xff]
    %v62 = vld [vmem:[%s3] sm:$0x1]
    %v64 = vlaneseq
    %v65 = vshrl.u32 %v64, 7
    %v66 = vsub.s32 0, %v65
    %v67 = vrot.slane %v62, %v66
    %69 = vmatprep.subr.mxu0 0.0
    %70 = vmatpush1.xpose.msra.mxu0 %v46
    %71 = vmatprep.subr.mxu0 0.0
    %72 = vmatpush1.xpose.msra.mxu0 %v47
    %73 = vmatprep.subr.mxu0 0.0
    %74 = vmatpush1.xpose.msra.mxu0 %v48
    %75 = vmatprep.subr.mxu0 0.0
    %76 = vmatpush1.xpose.msra.mxu0 %v49
    %77 = vmatprep.subr.mxu0 0.0
    %78 = vmatpush1.xpose.msra.mxu0 %v50
    %79 = vmatprep.subr.mxu0 0.0
    %80 = vmatpush1.xpose.msra.mxu0 %v51
    %81 = vmatprep.subr.mxu0 0.0
    %82 = vmatpush1.xpose.msra.mxu0 %v52
    %83 = vmatprep.subr.mxu0 0.0
    %84 = vmatpush1.xpose.msra.mxu0 %v53
    %85 = vmatprep.subr.mxu0 0.0
    %86 = vmatpush1.xpose.msra.mxu0 %v54
    %87 = vmatprep.subr.mxu0 0.0
    %88 = vmatpush1.xpose.msra.mxu0 %v55
    %89 = vmatprep.subr.mxu0 0.0
    %90 = vmatpush1.xpose.msra.mxu0 %v56
    %91 = vmatprep.subr.mxu0 0.0
    %92 = vmatpush1.xpose.msra.mxu0 %v57
    %93 = vmatprep.subr.mxu0 0.0
    %94 = vmatpush1.xpose.msra.mxu0 %v58
    %95 = vmatprep.subr.mxu0 0.0
    %96 = vmatpush1.xpose.msra.mxu0 %v59
    %97 = vmatprep.subr.mxu0 0.0
    %98 = vmatpush1.xpose.msra.mxu0 %v60
    %99 = vmatprep.subr.mxu0 0.0
    %100 = vmatpush1.xpose.msra.mxu0 %v61
    %101 = vmatprep.subr.mxu0 0.0
    %102 = vmatpush1.xpose.msra.mxu0 0.0
    %103 = vmatprep.subr.mxu0 0.0
    %104 = vmatpush1.xpose.msra.mxu0 0.0
    %105 = vmatprep.subr.mxu0 0.0
    %106 = vmatpush1.xpose.msra.mxu0 0.0
    %107 = vmatprep.subr.mxu0 0.0
    %108 = vmatpush1.xpose.msra.mxu0 0.0
    %109 = vmatprep.subr.mxu0 0.0
    %110 = vmatpush1.xpose.msra.mxu0 0.0
    %111 = vmatprep.subr.mxu0 0.0
    %112 = vmatpush1.xpose.msra.mxu0 0.0
    %113 = vmatprep.subr.mxu0 0.0
    %114 = vmatpush1.xpose.msra.mxu0 0.0
    %115 = vmatprep.subr.mxu0 0.0
    %116 = vmatpush1.xpose.msra.mxu0 0.0
    %117 = vmatprep.subr.mxu0 0.0
    %118 = vmatpush1.xpose.msra.mxu0 0.0
    %119 = vmatprep.subr.mxu0 0.0
    %120 = vmatpush1.xpose.msra.mxu0 0.0
    %121 = vmatprep.subr.mxu0 0.0
    %122 = vmatpush1.xpose.msra.mxu0 0.0
    %123 = vmatprep.subr.mxu0 0.0
    %124 = vmatpush1.xpose.msra.mxu0 0.0
    %125 = vmatprep.subr.mxu0 0.0
    %126 = vmatpush1.xpose.msra.mxu0 0.0
    %127 = vmatprep.subr.mxu0 0.0
    %128 = vmatpush1.xpose.msra.mxu0 0.0
    %129 = vmatprep.subr.mxu0 0.0
    %130 = vmatpush1.xpose.msra.mxu0 0.0
    %131 = vmatprep.subr.mxu0 0.0
    %132 = vmatpush1.xpose.msra.mxu0 0.0
    %133 = vmatprep.mubr.f32.mxu0 0.0
    %134 = vmatmul.mubr.f32.gmra.mrb[0].mxu0 %v45
    %v135 = vpop.f32.mrb[0].mxu0
    %v136 = vadd.f32 %v67, %v135
    %v137 = vpop.f32.mrb[0].mxu0
    %138 = vdwg.mxu0
    %s139 = sld [smem:[#allocation2]]
    %v140 = vmax.f32 %v136, 0.0
    %v141 = vstv %s139
    %v142 = vmul.f32 %v141, %v140
    %v143 = vadd.f32 %v142, %v45
    %144 = vst [vmem:[#allocation8] sm:$0xff] %v143
    // Predicated region
    $region26: #{tpu_custom_call.1} parent=1 // pred_check
      _
    $region27: #{tpu_custom_call.1} parent=1 // pred_check_branch
      %146 = sbr.rel (0) target = $region29
    $region28: #{tpu_custom_call.1} parent=1 // pred_region
      %s148 = ssub.s32 128, 128
      %149 = vsyncadd [#allocation5], %s148
      %s151 = sshll.u32 [#allocation8], 4
      %s152 = int_to_ptr.vmem [resolvable:$true] %s151
      %154 = dma.vmem_to_hbm [thread:$0]  %s152, 128, %s4, [#allocation5]
    $region29: #{tpu_custom_call.1} parent=1 // pred_fallthru
      _
    // Predicated region
    $region30: #{tpu_custom_call.1} parent=1 // pred_check
      _
    $region31: #{tpu_custom_call.1} parent=1 // pred_check_branch
      %156 = sbr.rel (0) target = $region33
    $region32: #{tpu_custom_call.1} parent=1 // pred_region
      %157 = dma.done [#allocation5], 128
    $region33: #{tpu_custom_call.1} parent=1 // pred_fallthru
      _
    %158 = vsyncpa [#allocation4], 1
    %159 = vsyncpa [#allocation7], 1
    %160 = vsyncpa [#allocation5], 1

</llo_original>
